<compile_context>
chip_gen: v5e
topology: v5e:2x2
jax: 0.10.0
libtpu: 0.0.40
codegen_flags: <defaults>
</compile_context>

<pallas_src>
import functools

import jax
import jax.numpy as jnp
from jax.experimental import pallas as pl
from jax.experimental.pallas import tpu as pltpu

# Hyper-parameters (module-level globals in the original model.py)
N_HIDDEN1 = 64
N_HIDDEN2 = 32
DROP_P = 0.3

_LANE = 128


def _round_up(n, m):
    return ((n + m - 1) // m) * m


def _pad2d(a, rows, cols):
    r, c = a.shape
    return jnp.pad(a, ((0, rows - r), (0, cols - c)))


def user_mlp_kernel(x_ref, u1_ref, u2_ref,
                    w1_ref, b1_ref, w2_ref, b2_ref, w3_ref, b3_ref,
                    o_ref):
    """One batch tile of the full forward pass (everything lane-padded to 128)."""
    x = x_ref[...]                                                   # bf16 (TILE_B, 128)

    h1 = jnp.dot(x, w1_ref[...], preferred_element_type=jnp.float32) + b1_ref[...]
    h1 = jnp.maximum(h1, 0.0)
    # Dropout: keep with prob (1 - p); the 1/(1-p) rescale is folded into w2.
    h1 = jnp.where(u1_ref[...] >= DROP_P, h1, 0.0)

    h2 = jnp.dot(h1.astype(w2_ref.dtype), w2_ref[...],
                 preferred_element_type=jnp.float32) + b2_ref[...]
    h2 = jnp.maximum(h2, 0.0)
    h2 = jnp.where(u2_ref[...] >= DROP_P, h2, 0.0)                   # rescale folded into w3

    out = jnp.dot(h2.astype(w3_ref.dtype), w3_ref[...],
                  preferred_element_type=jnp.float32) + b3_ref[...]
    o_ref[...] = jnp.maximum(out, 0.0).astype(o_ref.dtype)


def user_mlp(x, params, key, *, training=True, tile_b=256):
    """Pallas forward pass. x: [B, D_in] f32; params as produced by init_params."""
    w1, b1, w2, b2, w3, b3 = params
    B, d_in = x.shape
    out_dim = w3.shape[1]

    # Lane-pad all feature dims to 128; pick a batch tile (multiple of 8) and pad B to it.
    d_in_p = _round_up(d_in, _LANE)
    h1_p = _round_up(N_HIDDEN1, _LANE)
    h2_p = _round_up(N_HIDDEN2, _LANE)
    out_p = _round_up(out_dim, _LANE)
    tile_b = min(tile_b, _round_up(B, 8))
    b_p = _round_up(B, tile_b)

    inv_keep = 1.0 / (1.0 - DROP_P) if training else 1.0

    # Weight prep (once per call; in a real training loop this would be jit-cached).
    w1p = _pad2d(w1, d_in_p, h1_p).astype(jnp.bfloat16)
    b1p = _pad2d(b1, 1, h1_p).astype(jnp.float32)
    w2p = _pad2d(w2 * inv_keep, h1_p, h2_p).astype(jnp.bfloat16)     # fold dropout-1 rescale
    b2p = _pad2d(b2, 1, h2_p).astype(jnp.float32)
    w3p = _pad2d(w3 * inv_keep, h2_p, out_p).astype(jnp.bfloat16)    # fold dropout-2 rescale
    b3p = _pad2d(b3, 1, out_p).astype(jnp.float32)

    xp = _pad2d(x, b_p, d_in_p).astype(jnp.bfloat16)

    if training:
        k1, k2 = jax.random.split(key)
        u1 = jax.random.uniform(k1, (b_p, h1_p), jnp.float32)
        u2 = jax.random.uniform(k2, (b_p, h2_p), jnp.float32)
    else:
        # Eval path: all-keep masks, no rescale (inv_keep == 1 above).
        u1 = jnp.ones((b_p, h1_p), jnp.float32)
        u2 = jnp.ones((b_p, h2_p), jnp.float32)

    grid = (b_p // tile_b,)

    out = pl.pallas_call(
        user_mlp_kernel,
        out_shape=jax.ShapeDtypeStruct((b_p, out_p), jnp.float32),
        grid=grid,
        in_specs=[
            pl.BlockSpec((tile_b, d_in_p), lambda i: (i, 0)),   # x tile (streamed)
            pl.BlockSpec((tile_b, h1_p), lambda i: (i, 0)),     # dropout uniforms 1
            pl.BlockSpec((tile_b, h2_p), lambda i: (i, 0)),     # dropout uniforms 2
            pl.BlockSpec((d_in_p, h1_p), lambda i: (0, 0)),     # w1 (resident)
            pl.BlockSpec((1, h1_p), lambda i: (0, 0)),          # b1
            pl.BlockSpec((h1_p, h2_p), lambda i: (0, 0)),       # w2
            pl.BlockSpec((1, h2_p), lambda i: (0, 0)),          # b2
            pl.BlockSpec((h2_p, out_p), lambda i: (0, 0)),      # w3
            pl.BlockSpec((1, out_p), lambda i: (0, 0)),         # b3
        ],
        out_specs=pl.BlockSpec((tile_b, out_p), lambda i: (i, 0)),
        compiler_params=pltpu.CompilerParams(
            dimension_semantics=("parallel",)),
    )(xp, u1, u2, w1p, b1p, w2p, b2p, w3p, b3p)

    return out[:B, :out_dim]


def init_params(key, input_dim, output_dim):
    """Deterministic parameter init (uniform +-1/sqrt(fan_in), like nn.Linear)."""
    def linear(k, fan_in, fan_out):
        kw, kb = jax.random.split(k)
        bound = 1.0 / jnp.sqrt(fan_in)
        w = jax.random.uniform(kw, (fan_in, fan_out), jnp.float32, -bound, bound)
        b = jax.random.uniform(kb, (1, fan_out), jnp.float32, -bound, bound)
        return w, b

    k1, k2, k3 = jax.random.split(key, 3)
    w1, b1 = linear(k1, input_dim, N_HIDDEN1)
    w2, b2 = linear(k2, N_HIDDEN1, N_HIDDEN2)
    w3, b3 = linear(k3, N_HIDDEN2, output_dim)
    return (w1, b1, w2, b2, w3, b3)


if __name__ == "__main__":
    # Boston-housing style shapes: 13 input features, 1 regression output.
    INPUT_DIM = 13
    OUTPUT_DIM = 1
    BATCH = 8

    key = jax.random.PRNGKey(0)
    kx, kp, kd = jax.random.split(key, 3)

    x = jax.random.normal(kx, (BATCH, INPUT_DIM), dtype=jnp.float32)
    params = init_params(kp, INPUT_DIM, OUTPUT_DIM)

    out = user_mlp(x, params, kd, training=True)
    out = jax.block_until_ready(out)

    assert out.shape == (BATCH, OUTPUT_DIM)
    assert bool(jnp.all(out >= 0.0))  # final ReLU
    print("KERNEL_OK")
</pallas_src>

<mosaic_0001>
module attributes {stable_mosaic.version = 11 : i64} {
  func.func @user_mlp_kernel(%arg0: i32, %arg1: memref<8x128xbf16, #tpu.memory_space<vmem>>, %arg2: memref<8x128xf32, #tpu.memory_space<vmem>>, %arg3: memref<8x128xf32, #tpu.memory_space<vmem>>, %arg4: memref<128x128xbf16, #tpu.memory_space<vmem>>, %arg5: memref<1x128xf32, #tpu.memory_space<vmem>>, %arg6: memref<128x128xbf16, #tpu.memory_space<vmem>>, %arg7: memref<1x128xf32, #tpu.memory_space<vmem>>, %arg8: memref<128x128xbf16, #tpu.memory_space<vmem>>, %arg9: memref<1x128xf32, #tpu.memory_space<vmem>>, %arg10: memref<8x128xf32, #tpu.memory_space<vmem>>) attributes {dimension_semantics = [#tpu.dimension_semantics<parallel>], iteration_bounds = array<i64: 1>, scalar_prefetch = 0 : i64, scratch_operands = 0 : i64, tpu.core_type = #tpu.core_type<tc>, window_params = [{transform_indices = @transform_0, window_bounds = array<i64: 8, 128>}, {transform_indices = @transform_1, window_bounds = array<i64: 8, 128>}, {transform_indices = @transform_2, window_bounds = array<i64: 8, 128>}, {pipeline_mode = #tpu.pipeline_mode<synchronous>, transform_indices = @transform_3, window_bounds = array<i64: 128, 128>}, {pipeline_mode = #tpu.pipeline_mode<synchronous>, transform_indices = @transform_4, window_bounds = array<i64: 1, 128>}, {pipeline_mode = #tpu.pipeline_mode<synchronous>, transform_indices = @transform_5, window_bounds = array<i64: 128, 128>}, {pipeline_mode = #tpu.pipeline_mode<synchronous>, transform_indices = @transform_6, window_bounds = array<i64: 1, 128>}, {pipeline_mode = #tpu.pipeline_mode<synchronous>, transform_indices = @transform_7, window_bounds = array<i64: 128, 128>}, {pipeline_mode = #tpu.pipeline_mode<synchronous>, transform_indices = @transform_8, window_bounds = array<i64: 1, 128>}, {transform_indices = @transform_9, window_bounds = array<i64: 8, 128>}]} {
    %c0 = arith.constant 0 : index
    %c0_0 = arith.constant 0 : index
    %0 = vector.load %arg1[%c0, %c0_0] : memref<8x128xbf16, #tpu.memory_space<vmem>>, vector<8x128xbf16>
    %c0_1 = arith.constant 0 : index
    %c0_2 = arith.constant 0 : index
    %1 = vector.load %arg4[%c0_1, %c0_2] : memref<128x128xbf16, #tpu.memory_space<vmem>>, vector<128x128xbf16>
    %cst = arith.constant dense<0.000000e+00> : vector<8x128xf32>
    %2 = tpu.matmul %0, %1, %cst {dimension_numbers = #tpu.dot_dimension_numbers<[1], [0], [0], [1], [0, 0, 1, 1], [], []>} : vector<8x128xbf16>, vector<128x128xbf16>, vector<8x128xf32> -> vector<8x128xf32>
    %c0_3 = arith.constant 0 : index
    %c0_4 = arith.constant 0 : index
    %3 = vector.load %arg5[%c0_3, %c0_4] : memref<1x128xf32, #tpu.memory_space<vmem>>, vector<1x128xf32>
    %4 = vector.broadcast %3 : vector<1x128xf32> to vector<8x128xf32>
    %5 = arith.addf %2, %4 : vector<8x128xf32>
    %cst_5 = arith.constant 0.000000e+00 : f32
    %6 = vector.broadcast %cst_5 : f32 to vector<8x128xf32>
    %7 = arith.maximumf %5, %6 : vector<8x128xf32>
    %c0_6 = arith.constant 0 : index
    %c0_7 = arith.constant 0 : index
    %8 = vector.load %arg2[%c0_6, %c0_7] : memref<8x128xf32, #tpu.memory_space<vmem>>, vector<8x128xf32>
    %cst_8 = arith.constant 3.000000e-01 : f32
    %9 = vector.broadcast %cst_8 : f32 to vector<8x128xf32>
    %10 = arith.cmpf oge, %8, %9 : vector<8x128xf32>
    %cst_9 = arith.constant 0.000000e+00 : f32
    %11 = vector.broadcast %cst_9 : f32 to vector<8x128xf32>
    %12 = arith.select %10, %7, %11 : vector<8x128xi1>, vector<8x128xf32>
    %13 = arith.truncf %12 : vector<8x128xf32> to vector<8x128xbf16>
    %c0_10 = arith.constant 0 : index
    %c0_11 = arith.constant 0 : index
    %14 = vector.load %arg6[%c0_10, %c0_11] : memref<128x128xbf16, #tpu.memory_space<vmem>>, vector<128x128xbf16>
    %cst_12 = arith.constant dense<0.000000e+00> : vector<8x128xf32>
    %15 = tpu.matmul %13, %14, %cst_12 {dimension_numbers = #tpu.dot_dimension_numbers<[1], [0], [0], [1], [0, 0, 1, 1], [], []>} : vector<8x128xbf16>, vector<128x128xbf16>, vector<8x128xf32> -> vector<8x128xf32>
    %c0_13 = arith.constant 0 : index
    %c0_14 = arith.constant 0 : index
    %16 = vector.load %arg7[%c0_13, %c0_14] : memref<1x128xf32, #tpu.memory_space<vmem>>, vector<1x128xf32>
    %17 = vector.broadcast %16 : vector<1x128xf32> to vector<8x128xf32>
    %18 = arith.addf %15, %17 : vector<8x128xf32>
    %cst_15 = arith.constant 0.000000e+00 : f32
    %19 = vector.broadcast %cst_15 : f32 to vector<8x128xf32>
    %20 = arith.maximumf %18, %19 : vector<8x128xf32>
    %c0_16 = arith.constant 0 : index
    %c0_17 = arith.constant 0 : index
    %21 = vector.load %arg3[%c0_16, %c0_17] : memref<8x128xf32, #tpu.memory_space<vmem>>, vector<8x128xf32>
    %cst_18 = arith.constant 3.000000e-01 : f32
    %22 = vector.broadcast %cst_18 : f32 to vector<8x128xf32>
    %23 = arith.cmpf oge, %21, %22 : vector<8x128xf32>
    %cst_19 = arith.constant 0.000000e+00 : f32
    %24 = vector.broadcast %cst_19 : f32 to vector<8x128xf32>
    %25 = arith.select %23, %20, %24 : vector<8x128xi1>, vector<8x128xf32>
    %26 = arith.truncf %25 : vector<8x128xf32> to vector<8x128xbf16>
    %c0_20 = arith.constant 0 : index
    %c0_21 = arith.constant 0 : index
    %27 = vector.load %arg8[%c0_20, %c0_21] : memref<128x128xbf16, #tpu.memory_space<vmem>>, vector<128x128xbf16>
    %cst_22 = arith.constant dense<0.000000e+00> : vector<8x128xf32>
    %28 = tpu.matmul %26, %27, %cst_22 {dimension_numbers = #tpu.dot_dimension_numbers<[1], [0], [0], [1], [0, 0, 1, 1], [], []>} : vector<8x128xbf16>, vector<128x128xbf16>, vector<8x128xf32> -> vector<8x128xf32>
    %c0_23 = arith.constant 0 : index
    %c0_24 = arith.constant 0 : index
    %29 = vector.load %arg9[%c0_23, %c0_24] : memref<1x128xf32, #tpu.memory_space<vmem>>, vector<1x128xf32>
    %30 = vector.broadcast %29 : vector<1x128xf32> to vector<8x128xf32>
    %31 = arith.addf %28, %30 : vector<8x128xf32>
    %cst_25 = arith.constant 0.000000e+00 : f32
    %32 = vector.broadcast %cst_25 : f32 to vector<8x128xf32>
    %33 = arith.maximumf %31, %32 : vector<8x128xf32>
    %c0_26 = arith.constant 0 : index
    %c0_27 = arith.constant 0 : index
    %34 = vector.load %arg10[%c0_26, %c0_27] : memref<8x128xf32, #tpu.memory_space<vmem>>, vector<8x128xf32>
    tpu.vector_store %arg10[%c0_26, %c0_27], %33 {strides = array<i32>} : memref<8x128xf32, #tpu.memory_space<vmem>>, vector<8x128xf32>,
    return
  }
  func.func @transform_0(%arg0: i32) -> (i32, i32) {
    %c0_i32 = arith.constant 0 : i32
    %c0_i32_0 = arith.constant 0 : i32
    return %arg0, %c0_i32 : i32, i32
  }
  func.func @transform_1(%arg0: i32) -> (i32, i32) {
    %c0_i32 = arith.constant 0 : i32
    %c0_i32_0 = arith.constant 0 : i32
    return %arg0, %c0_i32 : i32, i32
  }
  func.func @transform_2(%arg0: i32) -> (i32, i32) {
    %c0_i32 = arith.constant 0 : i32
    %c0_i32_0 = arith.constant 0 : i32
    return %arg0, %c0_i32 : i32, i32
  }
  func.func @transform_3(%arg0: i32) -> (i32, i32) {
    %c0_i32 = arith.constant 0 : i32
    %c0_i32_0 = arith.constant 0 : i32
    %c0_i32_1 = arith.constant 0 : i32
    return %c0_i32, %c0_i32_0 : i32, i32
  }
  func.func @transform_4(%arg0: i32) -> (i32, i32) {
    %c0_i32 = arith.constant 0 : i32
    %c0_i32_0 = arith.constant 0 : i32
    %c0_i32_1 = arith.constant 0 : i32
    return %c0_i32, %c0_i32_0 : i32, i32
  }
  func.func @transform_5(%arg0: i32) -> (i32, i32) {
    %c0_i32 = arith.constant 0 : i32
    %c0_i32_0 = arith.constant 0 : i32
    %c0_i32_1 = arith.constant 0 : i32
    return %c0_i32, %c0_i32_0 : i32, i32
  }
  func.func @transform_6(%arg0: i32) -> (i32, i32) {
    %c0_i32 = arith.constant 0 : i32
    %c0_i32_0 = arith.constant 0 : i32
    %c0_i32_1 = arith.constant 0 : i32
    return %c0_i32, %c0_i32_0 : i32, i32
  }
  func.func @transform_7(%arg0: i32) -> (i32, i32) {
    %c0_i32 = arith.constant 0 : i32
    %c0_i32_0 = arith.constant 0 : i32
    %c0_i32_1 = arith.constant 0 : i32
    return %c0_i32, %c0_i32_0 : i32, i32
  }
  func.func @transform_8(%arg0: i32) -> (i32, i32) {
    %c0_i32 = arith.constant 0 : i32
    %c0_i32_0 = arith.constant 0 : i32
    %c0_i32_1 = arith.constant 0 : i32
    return %c0_i32, %c0_i32_0 : i32, i32
  }
  func.func @transform_9(%arg0: i32) -> (i32, i32) {
    %c0_i32 = arith.constant 0 : i32
    %c0_i32_0 = arith.constant 0 : i32
    return %arg0, %c0_i32 : i32, i32
  }
}

</mosaic_0001>

<llo_original>
// kernel: tpu_custom_call.1
$region0: #{tpu_custom_call.1}
  #allocation0 [shape = 'u32[]', space=smem, size = 0x4, offset = 0x4, fixed_abs, tag = 'smem constant byte address 0x4 - core index']
  #allocation1 [shape = 'u32[72,128]{1,0:T(1,128)}', space=vmem, size = 0x9000, scoped, tag = 'internal scratch']
  %s0 = inlined_call_operand.hbm [shape: bf16[8,128], index: 0, kind: input, shape index: {}]
  %s1 = inlined_call_operand.hbm [shape: f32[8,128], index: 1, kind: input, shape index: {}]
  %s2 = inlined_call_operand.hbm [shape: f32[8,128], index: 2, kind: input, shape index: {}]
  %s3 = inlined_call_operand.hbm [shape: bf16[128,128], index: 3, kind: input, shape index: {}]
  %s4 = inlined_call_operand.vmem [shape: f32[1,128], index: 4, kind: input, shape index: {}]
  %s5 = inlined_call_operand.hbm [shape: bf16[128,128], index: 5, kind: input, shape index: {}]
  %s6 = inlined_call_operand.vmem [shape: f32[1,128], index: 6, kind: input, shape index: {}]
  %s7 = inlined_call_operand.hbm [shape: bf16[128,128], index: 7, kind: input, shape index: {}]
  %s8 = inlined_call_operand.vmem [shape: f32[1,128], index: 8, kind: input, shape index: {}]
  %s9 = inlined_call_operand.hbm [shape: f32[8,128], index: 9, kind: output, shape index: {}]
  %s10 = sld [smem:[#allocation0]]
  $region70: #{tpu_custom_call.1} parent=0
    _
  %s12 = ssub.s32 1, %s10
  %s13 = scalar_select 0, %s12, %s10
  $region1: #{tpu_custom_call.1} parent=0
    #allocation2 [shape = 'u8[2048]{0}', space=vmem, size = 0x800, scoped, tag = 'input window, operand 0, single buffered']
    #allocation3 [shape = 's32[1]{0}', space=sflag, size = 0x4, scoped, tag = 'scoped memory for tpu_custom_call.1']
    #allocation4 [shape = 's32[1]{0}', space=sflag, size = 0x4, scoped, tag = 'scoped memory for tpu_custom_call.1']
    #allocation5 [shape = 'u8[4096]{0}', space=vmem, size = 0x1000, scoped, tag = 'input window, operand 1, single buffered']
    #allocation6 [shape = 's32[1]{0}', space=sflag, size = 0x4, scoped, tag = 'scoped memory for tpu_custom_call.1']
    #allocation7 [shape = 'u8[4096]{0}', space=vmem, size = 0x1000, scoped, tag = 'input window, operand 2, single buffered']
    #allocation8 [shape = 'u8[32768]{0}', space=vmem, size = 0x8000, scoped, tag = 'input window, operand 3, single buffered']
    #allocation9 [shape = 's32[1]{0}', space=sflag, size = 0x4, scoped, tag = 'scoped memory for tpu_custom_call.1']
    #allocation10 [shape = 'u8[32768]{0}', space=vmem, size = 0x8000, scoped, tag = 'input window, operand 5, single buffered']
    #allocation11 [shape = 'u8[32768]{0}', space=vmem, size = 0x8000, scoped, tag = 'input window, operand 7, single buffered']
    #allocation12 [shape = 's32[1]{0}', space=sflag, size = 0x4, scoped, tag = 'scoped memory for tpu_custom_call.1']
    #allocation13 [shape = 'u8[4096]{0}', space=vmem, size = 0x1000, scoped, tag = 'output window, operand 0, single buffered']
    %14 = vsyncpa [#allocation3], 0
    %15 = vsyncpa [#allocation6], 0
    %16 = vsyncpa [#allocation9], 0
    %17 = vsyncpa [#allocation12], 0
    %18 = vsyncpa [#allocation4], 0
    // Predicated region
    $region2: #{tpu_custom_call.1} parent=1 // pred_check
      _
    $region3: #{tpu_custom_call.1} parent=1 // pred_check_branch
      %20 = sbr.rel (0) target = $region5
    $region4: #{tpu_custom_call.1} parent=1 // pred_region
      %22 = vsyncadd [#allocation3], 0
      %s24 = sshll.u32 %s0, 4
      %s25 = int_to_ptr.hbm [resolvable:$true] %s24
      %s26 = sshll.u32 [#allocation2], 4
      %s27 = int_to_ptr.vmem [resolvable:$true] %s26
      %29 = dma.hbm_to_vmem [thread:$0]  %s25, 64, %s27, [#allocation3]
    $region5: #{tpu_custom_call.1} parent=1 // pred_fallthru
      _
    // Predicated region
    $region6: #{tpu_custom_call.1} parent=1 // pred_check
      _
    $region7: #{tpu_custom_call.1} parent=1 // pred_check_branch
      %31 = sbr.rel (0) target = $region9
    $region8: #{tpu_custom_call.1} parent=1 // pred_region
      %33 = vsyncadd [#allocation6], 0
      %s35 = sshll.u32 %s1, 4
      %s36 = int_to_ptr.hbm [resolvable:$true] %s35
      %s37 = sshll.u32 [#allocation5], 4
      %s38 = int_to_ptr.vmem [resolvable:$true] %s37
      %40 = dma.hbm_to_vmem [thread:$0]  %s36, 128, %s38, [#allocation6]
    $region9: #{tpu_custom_call.1} parent=1 // pred_fallthru
      _
    // Predicated region
    $region10: #{tpu_custom_call.1} parent=1 // pred_check
      _
    $region11: #{tpu_custom_call.1} parent=1 // pred_check_branch
      %42 = sbr.rel (0) target = $region13
    $region12: #{tpu_custom_call.1} parent=1 // pred_region
      %44 = vsyncadd [#allocation6], 0
      %s46 = sshll.u32 %s2, 4
      %s47 = int_to_ptr.hbm [resolvable:$true] %s46
      %s48 = sshll.u32 [#allocation7], 4
      %s49 = int_to_ptr.vmem [resolvable:$true] %s48
      %51 = dma.hbm_to_vmem [thread:$0]  %s47, 128, %s49, [#allocation6]
    $region13: #{tpu_custom_call.1} parent=1 // pred_fallthru
      _
    // Predicated region
    $region14: #{tpu_custom_call.1} parent=1 // pred_check
      _
    $region15: #{tpu_custom_call.1} parent=1 // pred_check_branch
      %53 = sbr.rel (0) target = $region17
    $region16: #{tpu_custom_call.1} parent=1 // pred_region
      %55 = vsyncadd [#allocation9], 0
      %s56 = sshll.u32 %s3, 4
      %s57 = int_to_ptr.hbm [resolvable:$true] %s56
      %s58 = sshll.u32 [#allocation8], 4
      %s59 = int_to_ptr.vmem [resolvable:$true] %s58
      %64 = dma.hbm_to_vmem [thread:$0]  %s57, 1024, %s59, [#allocation9], 64, 64, 4
    $region17: #{tpu_custom_call.1} parent=1 // pred_fallthru
      _
    // Predicated region
    $region18: #{tpu_custom_call.1} parent=1 // pred_check
      _
    $region19: #{tpu_custom_call.1} parent=1 // pred_check_branch
      %66 = sbr.rel (0) target = $region21
    $region20: #{tpu_custom_call.1} parent=1 // pred_region
      _
    $region21: #{tpu_custom_call.1} parent=1 // pred_fallthru
      _
    // Predicated region
    $region22: #{tpu_custom_call.1} parent=1 // pred_check
      _
    $region23: #{tpu_custom_call.1} parent=1 // pred_check_branch
      %68 = sbr.rel (0) target = $region25
    $region24: #{tpu_custom_call.1} parent=1 // pred_region
      %70 = vsyncadd [#allocation9], 0
      %s71 = sshll.u32 %s5, 4
      %s72 = int_to_ptr.hbm [resolvable:$true] %s71
      %s73 = sshll.u32 [#allocation10], 4
      %s74 = int_to_ptr.vmem [resolvable:$true] %s73
      %79 = dma.hbm_to_vmem [thread:$0]  %s72, 1024, %s74, [#allocation9], 64, 64, 4
    $region25: #{tpu_custom_call.1} parent=1 // pred_fallthru
      _
    // Predicated region
    $region26: #{tpu_custom_call.1} parent=1 // pred_check
      _
    $region27: #{tpu_custom_call.1} parent=1 // pred_check_branch
      %81 = sbr.rel (0) target = $region29
    $region28: #{tpu_custom_call.1} parent=1 // pred_region
      _
    $region29: #{tpu_custom_call.1} parent=1 // pred_fallthru
      _
    // Predicated region
    $region30: #{tpu_custom_call.1} parent=1 // pred_check
      _
    $region31: #{tpu_custom_call.1} parent=1 // pred_check_branch
      %83 = sbr.rel (0) target = $region33
    $region32: #{tpu_custom_call.1} parent=1 // pred_region
      %85 = vsyncadd [#allocation12], 0
      %s86 = sshll.u32 %s7, 4
      %s87 = int_to_ptr.hbm [resolvable:$true] %s86
      %s88 = sshll.u32 [#allocation11], 4
      %s89 = int_to_ptr.vmem [resolvable:$true] %s88
      %94 = dma.hbm_to_vmem [thread:$0]  %s87, 1024, %s89, [#allocation12], 64, 64, 4
    $region33: #{tpu_custom_call.1} parent=1 // pred_fallthru
      _
    // Predicated region
    $region34: #{tpu_custom_call.1} parent=1 // pred_check
      _
    $region35: #{tpu_custom_call.1} parent=1 // pred_check_branch
      %96 = sbr.rel (0) target = $region37
    $region36: #{tpu_custom_call.1} parent=1 // pred_region
      _
    $region37: #{tpu_custom_call.1} parent=1 // pred_fallthru
      _
    // Predicated region
    $region38: #{tpu_custom_call.1} parent=1 // pred_check
      _
    $region39: #{tpu_custom_call.1} parent=1 // pred_check_branch
      %98 = sbr.rel (0) target = $region41
    $region40: #{tpu_custom_call.1} parent=1 // pred_region
      %100 = dma.done [#allocation3], 64
    $region41: #{tpu_custom_call.1} parent=1 // pred_fallthru
      _
    // Predicated region
    $region42: #{tpu_custom_call.1} parent=1 // pred_check
      _
    $region43: #{tpu_custom_call.1} parent=1 // pred_check_branch
      %102 = sbr.rel (0) target = $region45
    $region44: #{tpu_custom_call.1} parent=1 // pred_region
      %104 = dma.done [#allocation6], 128
    $region45: #{tpu_custom_call.1} parent=1 // pred_fallthru
      _
    // Predicated region
    $region46: #{tpu_custom_call.1} parent=1 // pred_check
      _
    $region47: #{tpu_custom_call.1} parent=1 // pred_check_branch
      %106 = sbr.rel (0) target = $region49
    $region48: #{tpu_custom_call.1} parent=1 // pred_region
      %108 = dma.done [#allocation6], 128
    $region49: #{tpu_custom_call.1} parent=1 // pred_fallthru
      _
    // Predicated region
    $region50: #{tpu_custom_call.1} parent=1 // pred_check
      _
    $region51: #{tpu_custom_call.1} parent=1 // pred_check_branch
      %110 = sbr.rel (0) target = $region53
    $region52: #{tpu_custom_call.1} parent=1 // pred_region
      %112 = dma.done [#allocation9], 1024
    $region53: #{tpu_custom_call.1} parent=1 // pred_fallthru
      _
    // Predicated region
    $region54: #{tpu_custom_call.1} parent=1 // pred_check
      _
    $region55: #{tpu_custom_call.1} parent=1 // pred_check_branch
      %114 = sbr.rel (0) target = $region57
    $region56: #{tpu_custom_call.1} parent=1 // pred_region
      %116 = dma.done [#allocation9], 1024
    $region57: #{tpu_custom_call.1} parent=1 // pred_fallthru
      _
    // Predicated region
    $region58: #{tpu_custom_call.1} parent=1 // pred_check
      _
    $region59: #{tpu_custom_call.1} parent=1 // pred_check_branch
      %118 = sbr.rel (0) target = $region61
    $region60: #{tpu_custom_call.1} parent=1 // pred_region
      %120 = dma.done [#allocation12], 1024
    $region61: #{tpu_custom_call.1} parent=1 // pred_fallthru
      _
    %v121 = vld [vmem:[#allocation2] sm:$0xf]
    %v122 = vld [vmem:[#allocation8] sm:$0xf]
    %v123 = vld [vmem:[#allocation8 + $0x4] sm:$0xf]
    %v124 = vld [vmem:[#allocation8 + $0x8] sm:$0xf]
    %v125 = vld [vmem:[#allocation8 + $0xc] sm:$0xf]
    %v126 = vld [vmem:[#allocation8 + $0x10] sm:$0xf]
    %v127 = vld [vmem:[#allocation8 + $0x14] sm:$0xf]
    %v128 = vld [vmem:[#allocation8 + $0x18] sm:$0xf]
    %v129 = vld [vmem:[#allocation8 + $0x1c] sm:$0xf]
    %v130 = vld [vmem:[#allocation8 + $0x20] sm:$0xf]
    %v131 = vld [vmem:[#allocation8 + $0x24] sm:$0xf]
    %v132 = vld [vmem:[#allocation8 + $0x28] sm:$0xf]
    %v133 = vld [vmem:[#allocation8 + $0x2c] sm:$0xf]
    %v134 = vld [vmem:[#allocation8 + $0x30] sm:$0xf]
    %v135 = vld [vmem:[#allocation8 + $0x34] sm:$0xf]
    %v136 = vld [vmem:[#allocation8 + $0x38] sm:$0xf]
    %v137 = vld [vmem:[#allocation8 + $0x3c] sm:$0xf]
    %v138 = vld [vmem:[%s4] sm:$0x1]
    %v140 = vperm.slane %v138, 0
    %v158 = vunpack.c.l.b16 %v122
    %v159 = vunpack.c.l.b16 %v123
    %v160 = vunpack.c.l.b16 %v124
    %v161 = vunpack.c.l.b16 %v125
    %v162 = vunpack.c.l.b16 %v126
    %v163 = vunpack.c.l.b16 %v127
    %v164 = vunpack.c.l.b16 %v128
    %v165 = vunpack.c.l.b16 %v129
    %v166 = vunpack.c.l.b16 %v130
    %v167 = vunpack.c.l.b16 %v131
    %v168 = vunpack.c.l.b16 %v132
    %v169 = vunpack.c.l.b16 %v133
    %v170 = vunpack.c.l.b16 %v134
    %v171 = vunpack.c.l.b16 %v135
    %v172 = vunpack.c.l.b16 %v136
    %v173 = vunpack.c.l.b16 %v137
    %v174 = vpack.c.b16 %v159, %v158
    %v175 = vpack.c.b16 %v161, %v160
    %v176 = vpack.c.b16 %v163, %v162
    %v177 = vpack.c.b16 %v165, %v164
    %v178 = vpack.c.b16 %v167, %v166
    %v179 = vpack.c.b16 %v169, %v168
    %v180 = vpack.c.b16 %v171, %v170
    %v181 = vpack.c.b16 %v173, %v172
    %190 = vmatpush.bf16.msra.mxu0 %v181
    %191 = vmatpush.bf16.msra.mxu0 %v180
    %192 = vmatpush.bf16.msra.mxu0 %v179
    %193 = vmatpush.bf16.msra.mxu0 %v178
    %194 = vmatpush.bf16.msra.mxu0 %v177
    %195 = vmatpush.bf16.msra.mxu0 %v176
    %196 = vmatpush.bf16.msra.mxu0 %v175
    %197 = vmatpush.bf16.msra.mxu0 %v174
    %198 = vmatmul.bf16.gmra.mxu0 %v121
    %v199 = vpop.f32.mrf.mxu0
    %v200 = vadd.f32 %v140, %v199
    %v201 = vpop.f32.mrf.mxu0
    %202 = vdwg.mxu0
    %v203 = vmax.f32 %v200, 0.0
    %v204 = vld [vmem:[#allocation5] sm:$0xff]
    %vm205 = vcmp.ge.f32.partialorder %v204, 0.3
    %v206 = vsel %vm205, %v203, 0.0
    %v207 = vpack.c.bf16 %v206, %v206
    %v208 = vld [vmem:[#allocation10] sm:$0xf]
    %v209 = vld [vmem:[#allocation10 + $0x4] sm:$0xf]
    %v210 = vld [vmem:[#allocation10 + $0x8] sm:$0xf]
    %v211 = vld [vmem:[#allocation10 + $0xc] sm:$0xf]
    %v212 = vld [vmem:[#allocation10 + $0x10] sm:$0xf]
    %v213 = vld [vmem:[#allocation10 + $0x14] sm:$0xf]
    %v214 = vld [vmem:[#allocation10 + $0x18] sm:$0xf]
    %v215 = vld [vmem:[#allocation10 + $0x1c] sm:$0xf]
    %v216 = vld [vmem:[#allocation10 + $0x20] sm:$0xf]
    %v217 = vld [vmem:[#allocation10 + $0x24] sm:$0xf]
    %v218 = vld [vmem:[#allocation10 + $0x28] sm:$0xf]
    %v219 = vld [vmem:[#allocation10 + $0x2c] sm:$0xf]
    %v220 = vld [vmem:[#allocation10 + $0x30] sm:$0xf]
    %v221 = vld [vmem:[#allocation10 + $0x34] sm:$0xf]
    %v222 = vld [vmem:[#allocation10 + $0x38] sm:$0xf]
    %v223 = vld [vmem:[#allocation10 + $0x3c] sm:$0xf]
    %v224 = vld [vmem:[%s6] sm:$0x1]
    %v226 = vperm.slane %v224, 0
    %v244 = vunpack.c.l.b16 %v208
    %v245 = vunpack.c.l.b16 %v209
    %v246 = vunpack.c.l.b16 %v210
    %v247 = vunpack.c.l.b16 %v211
    %v248 = vunpack.c.l.b16 %v212
    %v249 = vunpack.c.l.b16 %v213
    %v250 = vunpack.c.l.b16 %v214
    %v251 = vunpack.c.l.b16 %v215
    %v252 = vunpack.c.l.b16 %v216
    %v253 = vunpack.c.l.b16 %v217
    %v254 = vunpack.c.l.b16 %v218
    %v255 = vunpack.c.l.b16 %v219
    %v256 = vunpack.c.l.b16 %v220
    %v257 = vunpack.c.l.b16 %v221
    %v258 = vunpack.c.l.b16 %v222
    %v259 = vunpack.c.l.b16 %v223
    %v260 = vpack.c.b16 %v245, %v244
    %v261 = vpack.c.b16 %v247, %v246
    %v262 = vpack.c.b16 %v249, %v248
    %v263 = vpack.c.b16 %v251, %v250
    %v264 = vpack.c.b16 %v253, %v252
    %v265 = vpack.c.b16 %v255, %v254
    %v266 = vpack.c.b16 %v257, %v256
    %v267 = vpack.c.b16 %v259, %v258
    %276 = vmatpush.bf16.msra.mxu0 %v267
    %277 = vmatpush.bf16.msra.mxu0 %v266
    %278 = vmatpush.bf16.msra.mxu0 %v265
    %279 = vmatpush.bf16.msra.mxu0 %v264
    %280 = vmatpush.bf16.msra.mxu0 %v263
    %281 = vmatpush.bf16.msra.mxu0 %v262
    %282 = vmatpush.bf16.msra.mxu0 %v261
    %283 = vmatpush.bf16.msra.mxu0 %v260
    %284 = vmatmul.bf16.gmra.mxu0 %v207
    %v285 = vpop.f32.mrf.mxu0
    %v286 = vadd.f32 %v226, %v285
    %v287 = vpop.f32.mrf.mxu0
    %288 = vdwg.mxu0
    %v289 = vmax.f32 %v286, 0.0
    %v290 = vld [vmem:[#allocation7] sm:$0xff]
    %vm291 = vcmp.ge.f32.partialorder %v290, 0.3
    %v292 = vsel %vm291, %v289, 0.0
    %v293 = vpack.c.bf16 %v292, %v292
    %v294 = vld [vmem:[#allocation11] sm:$0xf]
    %v295 = vld [vmem:[#allocation11 + $0x4] sm:$0xf]
    %v296 = vld [vmem:[#allocation11 + $0x8] sm:$0xf]
    %v297 = vld [vmem:[#allocation11 + $0xc] sm:$0xf]
    %v298 = vld [vmem:[#allocation11 + $0x10] sm:$0xf]
    %v299 = vld [vmem:[#allocation11 + $0x14] sm:$0xf]
    %v300 = vld [vmem:[#allocation11 + $0x18] sm:$0xf]
    %v301 = vld [vmem:[#allocation11 + $0x1c] sm:$0xf]
    %v302 = vld [vmem:[#allocation11 + $0x20] sm:$0xf]
    %v303 = vld [vmem:[#allocation11 + $0x24] sm:$0xf]
    %v304 = vld [vmem:[#allocation11 + $0x28] sm:$0xf]
    %v305 = vld [vmem:[#allocation11 + $0x2c] sm:$0xf]
    %v306 = vld [vmem:[#allocation11 + $0x30] sm:$0xf]
    %v307 = vld [vmem:[#allocation11 + $0x34] sm:$0xf]
    %v308 = vld [vmem:[#allocation11 + $0x38] sm:$0xf]
    %v309 = vld [vmem:[#allocation11 + $0x3c] sm:$0xf]
    %v310 = vld [vmem:[%s8] sm:$0x1]
    %v312 = vperm.slane %v310, 0
    %v330 = vunpack.c.l.b16 %v294
    %v331 = vunpack.c.l.b16 %v295
    %v332 = vunpack.c.l.b16 %v296
    %v333 = vunpack.c.l.b16 %v297
    %v334 = vunpack.c.l.b16 %v298
    %v335 = vunpack.c.l.b16 %v299
    %v336 = vunpack.c.l.b16 %v300
    %v337 = vunpack.c.l.b16 %v301
    %v338 = vunpack.c.l.b16 %v302
    %v339 = vunpack.c.l.b16 %v303
    %v340 = vunpack.c.l.b16 %v304
    %v341 = vunpack.c.l.b16 %v305
    %v342 = vunpack.c.l.b16 %v306
    %v343 = vunpack.c.l.b16 %v307
    %v344 = vunpack.c.l.b16 %v308
    %v345 = vunpack.c.l.b16 %v309
    %v346 = vpack.c.b16 %v331, %v330
    %v347 = vpack.c.b16 %v333, %v332
    %v348 = vpack.c.b16 %v335, %v334
    %v349 = vpack.c.b16 %v337, %v336
    %v350 = vpack.c.b16 %v339, %v338
    %v351 = vpack.c.b16 %v341, %v340
    %v352 = vpack.c.b16 %v343, %v342
    %v353 = vpack.c.b16 %v345, %v344
    %362 = vmatpush.bf16.msra.mxu0 %v353
    %363 = vmatpush.bf16.msra.mxu0 %v352
    %364 = vmatpush.bf16.msra.mxu0 %v351
    %365 = vmatpush.bf16.msra.mxu0 %v350
    %366 = vmatpush.bf16.msra.mxu0 %v349
    %367 = vmatpush.bf16.msra.mxu0 %v348
    %368 = vmatpush.bf16.msra.mxu0 %v347
    %369 = vmatpush.bf16.msra.mxu0 %v346
    %370 = vmatmul.bf16.gmra.mxu0 %v293
    %v371 = vpop.f32.mrf.mxu0
    %v372 = vadd.f32 %v312, %v371
    %v373 = vpop.f32.mrf.mxu0
    %374 = vdwg.mxu0
    %v375 = vmax.f32 %v372, 0.0
    %376 = vst [vmem:[#allocation13] sm:$0xff] %v375
    // Predicated region
    $region62: #{tpu_custom_call.1} parent=1 // pred_check
      _
    $region63: #{tpu_custom_call.1} parent=1 // pred_check_branch
      %378 = sbr.rel (0) target = $region65
    $region64: #{tpu_custom_call.1} parent=1 // pred_region
      %380 = vsyncadd [#allocation4], 0
      %s382 = sshll.u32 [#allocation13], 4
      %s383 = int_to_ptr.vmem [resolvable:$true] %s382
      %s384 = sshll.u32 %s9, 4
      %s385 = int_to_ptr.hbm [resolvable:$true] %s384
      %387 = dma.vmem_to_hbm [thread:$0]  %s383, 128, %s385, [#allocation4]
    $region65: #{tpu_custom_call.1} parent=1 // pred_fallthru
      _
    // Predicated region
    $region66: #{tpu_custom_call.1} parent=1 // pred_check
      _
    $region67: #{tpu_custom_call.1} parent=1 // pred_check_branch
      %389 = sbr.rel (0) target = $region69
    $region68: #{tpu_custom_call.1} parent=1 // pred_region
      %391 = dma.done [#allocation4], 128
    $region69: #{tpu_custom_call.1} parent=1 // pred_fallthru
      _
    %392 = vsyncpa [#allocation3], 1
    %393 = vsyncpa [#allocation6], 1
    %394 = vsyncpa [#allocation9], 1
    %395 = vsyncpa [#allocation12], 1
    %396 = vsyncpa [#allocation4], 1

</llo_original>
